<compile_context>
chip_gen: v5e
topology: v5e:2x2
jax: 0.10.0
libtpu: 0.0.40
codegen_flags: <defaults>
</compile_context>

<pallas_src>
import jax
import jax.numpy as jnp
from jax import lax
from jax.experimental import pallas as pl
from jax.experimental.pallas import tpu as pltpu


_TAPS = [(dy, dx) for dy in (-1, 0, 1) for dx in (-1, 0, 1)]  # row-major 3x3 taps


def _make_kernel(W, CP, L):
    """W: image width, CP: padded channel count, L: lanes per block (= B*HW)."""

    def kernel(x_ref, mask_ref, wm1_ref, sh1_ref, wm2_ref, sh2_ref,
               out_ref, patch_ref):
        # x_ref/out_ref: (CP, L); mask_ref: (9, L) f32 {0,1};
        # wm*: (CP, 9*CP); sh*: (CP, 1); patch_ref: (9*CP, L) VMEM scratch.

        # Per-tap validity masks, loaded once per step (reused by both convs).
        masks = [mask_ref[t:t + 1, :] for t in range(9)]

        wm1 = wm1_ref[...]
        wm2 = wm2_ref[...]
        sh1 = sh1_ref[...]
        sh2 = sh2_ref[...]

        def conv3x3(a, wm):
            # a: (CP, L) f32, channel-pad rows are zero.  Build the im2col patch
            # with 9 lane rolls (XLU) + mask multiplies; every store is a full,
            # sublane-aligned (CP, L) store.  Then one MXU matmul.
            for t, (dy, dx) in enumerate(_TAPS):
                s = dy * W + dx
                shifted = a if s == 0 else pltpu.roll(a, shift=(-s) % L, axis=1)
                patch_ref[t * CP:(t + 1) * CP, :] = shifted * masks[t]
            # (CP, 9*CP) @ (9*CP, L) -> (CP, L): single push, lane-dense result.
            return jnp.dot(wm, patch_ref[...], preferred_element_type=jnp.float32)

        x = x_ref[...].astype(jnp.float32)                    # (CP, L)
        h1 = jnp.maximum(conv3x3(x, wm1) + sh1, 0.0)          # conv1 -> bn1 -> relu
        y = conv3x3(h1, wm2) + sh2 + x                        # conv2 -> bn2 -> +x_in
        out_ref[...] = y.astype(out_ref.dtype)

    return kernel


def residual_block(x, w1, b1, g1, bt1, m1, v1, w2, b2, g2, bt2, m2, v2,
                   *, eps=1e-5, batch_block=None):
    """x: (N, C, H, W) float32 (NCHW).  Conv weights: (3, 3, Cin, Cout) HWIO.
    Returns (N, C, H, W)."""
    N, C, H, W = x.shape
    HW = H * W
    CP = ((C + 7) // 8) * 8      # channel dim rounded up to a sublane multiple

    # ---- Fold conv bias + eval-mode BN into the conv weights (scale) and a
    #      per-channel shift; lay the weights out as the im2col (CP, 9*CP) matrix
    #      (zero rows/cols for the channel padding).
    def fold(w, b, g, bt, m, v):
        s = (g / jnp.sqrt(v + eps)).astype(jnp.float32)                     # (C,)
        shift = ((b - m) * s + bt).astype(jnp.float32).reshape(C, 1)        # (C, 1)
        shift = jnp.pad(shift, ((0, CP - C), (0, 0)))                       # (CP, 1)
        wt = w.astype(jnp.float32) * s[None, None, None, :]                 # (3,3,Ci,Co)
        wt = jnp.transpose(wt, (3, 0, 1, 2)).reshape(C, 9, C)               # (Co,tap,Ci)
        wt = jnp.pad(wt, ((0, CP - C), (0, 0), (0, CP - C)))                # (CP,9,CP)
        return wt.reshape(CP, 9 * CP), shift

    wm1, sh1 = fold(w1, b1, g1, bt1, m1, v1)
    wm2, sh2 = fold(w2, b2, g2, bt2, m2, v2)

    # ---- activations: (N,C,H,W) -> (CP, N*HW): channels in sublanes (zero-padded
    #      to CP), batch*spatial in lanes.  One-time XLA transpose outside the kernel.
    xf = jnp.transpose(x.reshape(N, C, HW), (1, 0, 2)).reshape(C, N * HW)
    xf = jnp.pad(xf, ((0, CP - C), (0, 0)))

    # ---- images per grid step: grow B until per-step VMEM footprint is a few MiB
    #      (amortizes per-step overhead); on v7x keep >= 2 steps for megacore.
    if batch_block is None:
        per_image_vmem = (4 * CP + 9 * CP + 9) * HW * 4   # 2x-buf in+out, patch, mask
        budget = 8 << 20
        cap = max(1, min(N, budget // max(1, per_image_vmem)))
        try:
            kind = jax.devices()[0].device_kind.lower()
        except Exception:
            kind = ""
        if "v7" in kind and N >= 2:
            cap = min(cap, max(1, N // 2))     # >= 2 grid steps for the 2 TensorCores
        cands = [bb for bb in range(cap, 0, -1)
                 if N % bb == 0 and ((bb * HW) % 128 == 0 or N // bb == 1)]
        batch_block = cands[0] if cands else N
    B = batch_block
    assert N % B == 0, "batch_block must divide N"
    L = B * HW

    # ---- per-tap validity masks (zero padding of the 3x3 conv), pattern repeats
    #      every HW lanes; computed once here, DMA'd once (constant index_map).
    f = jnp.arange(L, dtype=jnp.int32) % HW
    hh = f // W
    ww = f % W
    mask_rows = []
    for dy, dx in _TAPS:
        valid = ((hh + dy >= 0) & (hh + dy < H) & (ww + dx >= 0) & (ww + dx < W))
        mask_rows.append(valid.astype(jnp.float32))
    masks = jnp.stack(mask_rows, axis=0)                      # (9, L)

    grid_spec = pltpu.PrefetchScalarGridSpec(
        num_scalar_prefetch=0,
        grid=(N // B,),
        in_specs=[
            pl.BlockSpec((CP, L), lambda n: (0, n)),          # x, lane-blocked by image group
            pl.BlockSpec((9, L), lambda n: (0, 0)),           # tap masks (constant)
            pl.BlockSpec((CP, 9 * CP), lambda n: (0, 0)),     # conv1 weights (BN-scaled)
            pl.BlockSpec((CP, 1), lambda n: (0, 0)),          # bn1 shift
            pl.BlockSpec((CP, 9 * CP), lambda n: (0, 0)),     # conv2 weights (BN-scaled)
            pl.BlockSpec((CP, 1), lambda n: (0, 0)),          # bn2 shift
        ],
        out_specs=pl.BlockSpec((CP, L), lambda n: (0, n)),
        scratch_shapes=[pltpu.VMEM((9 * CP, L), jnp.float32)],  # im2col patch
    )

    out = pl.pallas_call(
        _make_kernel(W, CP, L),
        out_shape=jax.ShapeDtypeStruct((CP, N * HW), x.dtype),
        grid_spec=grid_spec,
        compiler_params=pltpu.CompilerParams(
            dimension_semantics=("parallel",)),
    )(xf, masks, wm1, sh1, wm2, sh2)

    out = out[:C].reshape(C, N, HW)
    out = jnp.transpose(out, (1, 0, 2)).reshape(N, C, H, W)
    return out


def _reference(x, w1, b1, g1, bt1, m1, v1, w2, b2, g2, bt2, m2, v2, *, eps=1e-5):
    dn = lax.conv_dimension_numbers(x.shape, w1.shape, ('NCHW', 'HWIO', 'NCHW'))

    def conv_bn(a, w, b, g, bt, m, v):
        y = lax.conv_general_dilated(a, w, (1, 1), ((1, 1), (1, 1)),
                                     dimension_numbers=dn)
        y = y + b[None, :, None, None]
        return ((y - m[None, :, None, None]) / jnp.sqrt(v[None, :, None, None] + eps)
                * g[None, :, None, None] + bt[None, :, None, None])

    h = jnp.maximum(conv_bn(x, w1, b1, g1, bt1, m1, v1), 0.0)
    return conv_bn(h, w2, b2, g2, bt2, m2, v2) + x


if __name__ == "__main__":
    N, C, H, W = 2, 4, 16, 16   # small shapes: batch=2, channels=4, spatial=16 (NCHW)

    key = jax.random.PRNGKey(0)
    keys = jax.random.split(key, 13)

    x = jax.random.normal(keys[0], (N, C, H, W), jnp.float32)

    # Deterministic synthetic parameters (shapes follow nn.Conv2d / nn.BatchNorm2d).
    w1 = jax.random.normal(keys[1], (3, 3, C, C), jnp.float32) * 0.1
    b1 = jax.random.normal(keys[2], (C,), jnp.float32) * 0.1
    g1 = 1.0 + 0.1 * jax.random.normal(keys[3], (C,), jnp.float32)
    bt1 = 0.1 * jax.random.normal(keys[4], (C,), jnp.float32)
    m1 = 0.1 * jax.random.normal(keys[5], (C,), jnp.float32)
    v1 = jax.random.uniform(keys[6], (C,), jnp.float32, 0.5, 1.5)

    w2 = jax.random.normal(keys[7], (3, 3, C, C), jnp.float32) * 0.1
    b2 = jax.random.normal(keys[8], (C,), jnp.float32) * 0.1
    g2 = 1.0 + 0.1 * jax.random.normal(keys[9], (C,), jnp.float32)
    bt2 = 0.1 * jax.random.normal(keys[10], (C,), jnp.float32)
    m2 = 0.1 * jax.random.normal(keys[11], (C,), jnp.float32)
    v2 = jax.random.uniform(keys[12], (C,), jnp.float32, 0.5, 1.5)

    params = (w1, b1, g1, bt1, m1, v1, w2, b2, g2, bt2, m2, v2)

    out = residual_block(x, *params)
    out = jax.block_until_ready(out)

    ref = _reference(x, *params)
    assert out.shape == (N, C, H, W)
    err = float(jnp.max(jnp.abs(out - ref)))
    assert jnp.allclose(out, ref, atol=1e-4, rtol=1e-4), err

    print("KERNEL_OK")
</pallas_src>

<mosaic_0001>
module attributes {stable_mosaic.version = 11 : i64} {
  func.func @kernel(%arg0: i32, %arg1: memref<8x512xf32, #tpu.memory_space<vmem>>, %arg2: memref<9x512xf32, #tpu.memory_space<vmem>>, %arg3: memref<8x72xf32, #tpu.memory_space<vmem>>, %arg4: memref<8x1xf32, #tpu.memory_space<vmem>>, %arg5: memref<8x72xf32, #tpu.memory_space<vmem>>, %arg6: memref<8x1xf32, #tpu.memory_space<vmem>>, %arg7: memref<8x512xf32, #tpu.memory_space<vmem>>, %arg8: memref<72x512xf32, #tpu.memory_space<vmem>>) attributes {dimension_semantics = [#tpu.dimension_semantics<parallel>], iteration_bounds = array<i64: 1>, scalar_prefetch = 0 : i64, scratch_operands = 1 : i64, tpu.core_type = #tpu.core_type<tc>, window_params = [{transform_indices = @transform_0, window_bounds = array<i64: 8, 512>}, {pipeline_mode = #tpu.pipeline_mode<synchronous>, transform_indices = @transform_1, window_bounds = array<i64: 9, 512>}, {pipeline_mode = #tpu.pipeline_mode<synchronous>, transform_indices = @transform_2, window_bounds = array<i64: 8, 72>}, {pipeline_mode = #tpu.pipeline_mode<synchronous>, transform_indices = @transform_3, window_bounds = array<i64: 8, 1>}, {pipeline_mode = #tpu.pipeline_mode<synchronous>, transform_indices = @transform_4, window_bounds = array<i64: 8, 72>}, {pipeline_mode = #tpu.pipeline_mode<synchronous>, transform_indices = @transform_5, window_bounds = array<i64: 8, 1>}, {transform_indices = @transform_6, window_bounds = array<i64: 8, 512>}]} {
    %c0 = arith.constant 0 : index
    %c0_0 = arith.constant 0 : index
    %0 = vector.load %arg2[%c0, %c0_0] : memref<9x512xf32, #tpu.memory_space<vmem>>, vector<1x512xf32>
    %c1 = arith.constant 1 : index
    %c0_1 = arith.constant 0 : index
    %1 = vector.load %arg2[%c1, %c0_1] : memref<9x512xf32, #tpu.memory_space<vmem>>, vector<1x512xf32>
    %c2 = arith.constant 2 : index
    %c0_2 = arith.constant 0 : index
    %2 = vector.load %arg2[%c2, %c0_2] : memref<9x512xf32, #tpu.memory_space<vmem>>, vector<1x512xf32>
    %c3 = arith.constant 3 : index
    %c0_3 = arith.constant 0 : index
    %3 = vector.load %arg2[%c3, %c0_3] : memref<9x512xf32, #tpu.memory_space<vmem>>, vector<1x512xf32>
    %c4 = arith.constant 4 : index
    %c0_4 = arith.constant 0 : index
    %4 = vector.load %arg2[%c4, %c0_4] : memref<9x512xf32, #tpu.memory_space<vmem>>, vector<1x512xf32>
    %c5 = arith.constant 5 : index
    %c0_5 = arith.constant 0 : index
    %5 = vector.load %arg2[%c5, %c0_5] : memref<9x512xf32, #tpu.memory_space<vmem>>, vector<1x512xf32>
    %c6 = arith.constant 6 : index
    %c0_6 = arith.constant 0 : index
    %6 = vector.load %arg2[%c6, %c0_6] : memref<9x512xf32, #tpu.memory_space<vmem>>, vector<1x512xf32>
    %c7 = arith.constant 7 : index
    %c0_7 = arith.constant 0 : index
    %7 = vector.load %arg2[%c7, %c0_7] : memref<9x512xf32, #tpu.memory_space<vmem>>, vector<1x512xf32>
    %c8 = arith.constant 8 : index
    %c0_8 = arith.constant 0 : index
    %8 = vector.load %arg2[%c8, %c0_8] : memref<9x512xf32, #tpu.memory_space<vmem>>, vector<1x512xf32>
    %c0_9 = arith.constant 0 : index
    %c0_10 = arith.constant 0 : index
    %9 = vector.load %arg3[%c0_9, %c0_10] : memref<8x72xf32, #tpu.memory_space<vmem>>, vector<8x72xf32>
    %c0_11 = arith.constant 0 : index
    %c0_12 = arith.constant 0 : index
    %10 = vector.load %arg5[%c0_11, %c0_12] : memref<8x72xf32, #tpu.memory_space<vmem>>, vector<8x72xf32>
    %c0_13 = arith.constant 0 : index
    %c0_14 = arith.constant 0 : index
    %11 = vector.load %arg4[%c0_13, %c0_14] : memref<8x1xf32, #tpu.memory_space<vmem>>, vector<8x1xf32>
    %c0_15 = arith.constant 0 : index
    %c0_16 = arith.constant 0 : index
    %12 = vector.load %arg6[%c0_15, %c0_16] : memref<8x1xf32, #tpu.memory_space<vmem>>, vector<8x1xf32>
    %c0_17 = arith.constant 0 : index
    %c0_18 = arith.constant 0 : index
    %13 = vector.load %arg1[%c0_17, %c0_18] : memref<8x512xf32, #tpu.memory_space<vmem>>, vector<8x512xf32>
    %c17_i32 = arith.constant 17 : i32
    %14 = tpu.dynamic_rotate %13 by %c17_i32 dim 1 : vector<8x512xf32>, i32 -> vector<8x512xf32>
    %15 = vector.broadcast %0 : vector<1x512xf32> to vector<8x512xf32>
    %16 = arith.mulf %14, %15 : vector<8x512xf32>
    %c0_19 = arith.constant 0 : index
    %c0_20 = arith.constant 0 : index
    %17 = vector.load %arg8[%c0_19, %c0_20] : memref<72x512xf32, #tpu.memory_space<vmem>>, vector<8x512xf32>
    tpu.vector_store %arg8[%c0_19, %c0_20], %16 {strides = array<i32>} : memref<72x512xf32, #tpu.memory_space<vmem>>, vector<8x512xf32>,
    %c16_i32 = arith.constant 16 : i32
    %18 = tpu.dynamic_rotate %13 by %c16_i32 dim 1 : vector<8x512xf32>, i32 -> vector<8x512xf32>
    %19 = vector.broadcast %1 : vector<1x512xf32> to vector<8x512xf32>
    %20 = arith.mulf %18, %19 : vector<8x512xf32>
    %c8_21 = arith.constant 8 : index
    %c0_22 = arith.constant 0 : index
    %21 = vector.load %arg8[%c8_21, %c0_22] : memref<72x512xf32, #tpu.memory_space<vmem>>, vector<8x512xf32>
    tpu.vector_store %arg8[%c8_21, %c0_22], %20 {strides = array<i32>} : memref<72x512xf32, #tpu.memory_space<vmem>>, vector<8x512xf32>,
    %c15_i32 = arith.constant 15 : i32
    %22 = tpu.dynamic_rotate %13 by %c15_i32 dim 1 : vector<8x512xf32>, i32 -> vector<8x512xf32>
    %23 = vector.broadcast %2 : vector<1x512xf32> to vector<8x512xf32>
    %24 = arith.mulf %22, %23 : vector<8x512xf32>
    %c16 = arith.constant 16 : index
    %c0_23 = arith.constant 0 : index
    %25 = vector.load %arg8[%c16, %c0_23] : memref<72x512xf32, #tpu.memory_space<vmem>>, vector<8x512xf32>
    tpu.vector_store %arg8[%c16, %c0_23], %24 {strides = array<i32>} : memref<72x512xf32, #tpu.memory_space<vmem>>, vector<8x512xf32>,
    %c1_i32 = arith.constant 1 : i32
    %26 = tpu.dynamic_rotate %13 by %c1_i32 dim 1 : vector<8x512xf32>, i32 -> vector<8x512xf32>
    %27 = vector.broadcast %3 : vector<1x512xf32> to vector<8x512xf32>
    %28 = arith.mulf %26, %27 : vector<8x512xf32>
    %c24 = arith.constant 24 : index
    %c0_24 = arith.constant 0 : index
    %29 = vector.load %arg8[%c24, %c0_24] : memref<72x512xf32, #tpu.memory_space<vmem>>, vector<8x512xf32>
    tpu.vector_store %arg8[%c24, %c0_24], %28 {strides = array<i32>} : memref<72x512xf32, #tpu.memory_space<vmem>>, vector<8x512xf32>,
    %30 = vector.broadcast %4 : vector<1x512xf32> to vector<8x512xf32>
    %31 = arith.mulf %13, %30 : vector<8x512xf32>
    %c32 = arith.constant 32 : index
    %c0_25 = arith.constant 0 : index
    %32 = vector.load %arg8[%c32, %c0_25] : memref<72x512xf32, #tpu.memory_space<vmem>>, vector<8x512xf32>
    tpu.vector_store %arg8[%c32, %c0_25], %31 {strides = array<i32>} : memref<72x512xf32, #tpu.memory_space<vmem>>, vector<8x512xf32>,
    %c511_i32 = arith.constant 511 : i32
    %33 = tpu.dynamic_rotate %13 by %c511_i32 dim 1 : vector<8x512xf32>, i32 -> vector<8x512xf32>
    %34 = vector.broadcast %5 : vector<1x512xf32> to vector<8x512xf32>
    %35 = arith.mulf %33, %34 : vector<8x512xf32>
    %c40 = arith.constant 40 : index
    %c0_26 = arith.constant 0 : index
    %36 = vector.load %arg8[%c40, %c0_26] : memref<72x512xf32, #tpu.memory_space<vmem>>, vector<8x512xf32>
    tpu.vector_store %arg8[%c40, %c0_26], %35 {strides = array<i32>} : memref<72x512xf32, #tpu.memory_space<vmem>>, vector<8x512xf32>,
    %c497_i32 = arith.constant 497 : i32
    %37 = tpu.dynamic_rotate %13 by %c497_i32 dim 1 : vector<8x512xf32>, i32 -> vector<8x512xf32>
    %38 = vector.broadcast %6 : vector<1x512xf32> to vector<8x512xf32>
    %39 = arith.mulf %37, %38 : vector<8x512xf32>
    %c48 = arith.constant 48 : index
    %c0_27 = arith.constant 0 : index
    %40 = vector.load %arg8[%c48, %c0_27] : memref<72x512xf32, #tpu.memory_space<vmem>>, vector<8x512xf32>
    tpu.vector_store %arg8[%c48, %c0_27], %39 {strides = array<i32>} : memref<72x512xf32, #tpu.memory_space<vmem>>, vector<8x512xf32>,
    %c496_i32 = arith.constant 496 : i32
    %41 = tpu.dynamic_rotate %13 by %c496_i32 dim 1 : vector<8x512xf32>, i32 -> vector<8x512xf32>
    %42 = vector.broadcast %7 : vector<1x512xf32> to vector<8x512xf32>
    %43 = arith.mulf %41, %42 : vector<8x512xf32>
    %c56 = arith.constant 56 : index
    %c0_28 = arith.constant 0 : index
    %44 = vector.load %arg8[%c56, %c0_28] : memref<72x512xf32, #tpu.memory_space<vmem>>, vector<8x512xf32>
    tpu.vector_store %arg8[%c56, %c0_28], %43 {strides = array<i32>} : memref<72x512xf32, #tpu.memory_space<vmem>>, vector<8x512xf32>,
    %c495_i32 = arith.constant 495 : i32
    %45 = tpu.dynamic_rotate %13 by %c495_i32 dim 1 : vector<8x512xf32>, i32 -> vector<8x512xf32>
    %46 = vector.broadcast %8 : vector<1x512xf32> to vector<8x512xf32>
    %47 = arith.mulf %45, %46 : vector<8x512xf32>
    %c64 = arith.constant 64 : index
    %c0_29 = arith.constant 0 : index
    %48 = vector.load %arg8[%c64, %c0_29] : memref<72x512xf32, #tpu.memory_space<vmem>>, vector<8x512xf32>
    tpu.vector_store %arg8[%c64, %c0_29], %47 {strides = array<i32>} : memref<72x512xf32, #tpu.memory_space<vmem>>, vector<8x512xf32>,
    %c0_30 = arith.constant 0 : index
    %c0_31 = arith.constant 0 : index
    %49 = vector.load %arg8[%c0_30, %c0_31] : memref<72x512xf32, #tpu.memory_space<vmem>>, vector<72x512xf32>
    %cst = arith.constant dense<0.000000e+00> : vector<8x512xf32>
    %50 = tpu.matmul %9, %49, %cst {dimension_numbers = #tpu.dot_dimension_numbers<[1], [0], [0], [1], [0, 0, 1, 1], [], []>} : vector<8x72xf32>, vector<72x512xf32>, vector<8x512xf32> -> vector<8x512xf32>
    %51 = vector.broadcast %11 : vector<8x1xf32> to vector<8x512xf32>
    %52 = arith.addf %50, %51 : vector<8x512xf32>
    %cst_32 = arith.constant 0.000000e+00 : f32
    %53 = vector.broadcast %cst_32 : f32 to vector<8x512xf32>
    %54 = arith.maximumf %52, %53 : vector<8x512xf32>
    %c17_i32_33 = arith.constant 17 : i32
    %55 = tpu.dynamic_rotate %54 by %c17_i32_33 dim 1 : vector<8x512xf32>, i32 -> vector<8x512xf32>
    %56 = vector.broadcast %0 : vector<1x512xf32> to vector<8x512xf32>
    %57 = arith.mulf %55, %56 : vector<8x512xf32>
    %c0_34 = arith.constant 0 : index
    %c0_35 = arith.constant 0 : index
    %58 = vector.load %arg8[%c0_34, %c0_35] : memref<72x512xf32, #tpu.memory_space<vmem>>, vector<8x512xf32>
    tpu.vector_store %arg8[%c0_34, %c0_35], %57 {strides = array<i32>} : memref<72x512xf32, #tpu.memory_space<vmem>>, vector<8x512xf32>,
    %c16_i32_36 = arith.constant 16 : i32
    %59 = tpu.dynamic_rotate %54 by %c16_i32_36 dim 1 : vector<8x512xf32>, i32 -> vector<8x512xf32>
    %60 = vector.broadcast %1 : vector<1x512xf32> to vector<8x512xf32>
    %61 = arith.mulf %59, %60 : vector<8x512xf32>
    %c8_37 = arith.constant 8 : index
    %c0_38 = arith.constant 0 : index
    %62 = vector.load %arg8[%c8_37, %c0_38] : memref<72x512xf32, #tpu.memory_space<vmem>>, vector<8x512xf32>
    tpu.vector_store %arg8[%c8_37, %c0_38], %61 {strides = array<i32>} : memref<72x512xf32, #tpu.memory_space<vmem>>, vector<8x512xf32>,
    %c15_i32_39 = arith.constant 15 : i32
    %63 = tpu.dynamic_rotate %54 by %c15_i32_39 dim 1 : vector<8x512xf32>, i32 -> vector<8x512xf32>
    %64 = vector.broadcast %2 : vector<1x512xf32> to vector<8x512xf32>
    %65 = arith.mulf %63, %64 : vector<8x512xf32>
    %c16_40 = arith.constant 16 : index
    %c0_41 = arith.constant 0 : index
    %66 = vector.load %arg8[%c16_40, %c0_41] : memref<72x512xf32, #tpu.memory_space<vmem>>, vector<8x512xf32>
    tpu.vector_store %arg8[%c16_40, %c0_41], %65 {strides = array<i32>} : memref<72x512xf32, #tpu.memory_space<vmem>>, vector<8x512xf32>,
    %c1_i32_42 = arith.constant 1 : i32
    %67 = tpu.dynamic_rotate %54 by %c1_i32_42 dim 1 : vector<8x512xf32>, i32 -> vector<8x512xf32>
    %68 = vector.broadcast %3 : vector<1x512xf32> to vector<8x512xf32>
    %69 = arith.mulf %67, %68 : vector<8x512xf32>
    %c24_43 = arith.constant 24 : index
    %c0_44 = arith.constant 0 : index
    %70 = vector.load %arg8[%c24_43, %c0_44] : memref<72x512xf32, #tpu.memory_space<vmem>>, vector<8x512xf32>
    tpu.vector_store %arg8[%c24_43, %c0_44], %69 {strides = array<i32>} : memref<72x512xf32, #tpu.memory_space<vmem>>, vector<8x512xf32>,
    %71 = vector.broadcast %4 : vector<1x512xf32> to vector<8x512xf32>
    %72 = arith.mulf %54, %71 : vector<8x512xf32>
    %c32_45 = arith.constant 32 : index
    %c0_46 = arith.constant 0 : index
    %73 = vector.load %arg8[%c32_45, %c0_46] : memref<72x512xf32, #tpu.memory_space<vmem>>, vector<8x512xf32>
    tpu.vector_store %arg8[%c32_45, %c0_46], %72 {strides = array<i32>} : memref<72x512xf32, #tpu.memory_space<vmem>>, vector<8x512xf32>,
    %c511_i32_47 = arith.constant 511 : i32
    %74 = tpu.dynamic_rotate %54 by %c511_i32_47 dim 1 : vector<8x512xf32>, i32 -> vector<8x512xf32>
    %75 = vector.broadcast %5 : vector<1x512xf32> to vector<8x512xf32>
    %76 = arith.mulf %74, %75 : vector<8x512xf32>
    %c40_48 = arith.constant 40 : index
    %c0_49 = arith.constant 0 : index
    %77 = vector.load %arg8[%c40_48, %c0_49] : memref<72x512xf32, #tpu.memory_space<vmem>>, vector<8x512xf32>
    tpu.vector_store %arg8[%c40_48, %c0_49], %76 {strides = array<i32>} : memref<72x512xf32, #tpu.memory_space<vmem>>, vector<8x512xf32>,
    %c497_i32_50 = arith.constant 497 : i32
    %78 = tpu.dynamic_rotate %54 by %c497_i32_50 dim 1 : vector<8x512xf32>, i32 -> vector<8x512xf32>
    %79 = vector.broadcast %6 : vector<1x512xf32> to vector<8x512xf32>
    %80 = arith.mulf %78, %79 : vector<8x512xf32>
    %c48_51 = arith.constant 48 : index
    %c0_52 = arith.constant 0 : index
    %81 = vector.load %arg8[%c48_51, %c0_52] : memref<72x512xf32, #tpu.memory_space<vmem>>, vector<8x512xf32>
    tpu.vector_store %arg8[%c48_51, %c0_52], %80 {strides = array<i32>} : memref<72x512xf32, #tpu.memory_space<vmem>>, vector<8x512xf32>,
    %c496_i32_53 = arith.constant 496 : i32
    %82 = tpu.dynamic_rotate %54 by %c496_i32_53 dim 1 : vector<8x512xf32>, i32 -> vector<8x512xf32>
    %83 = vector.broadcast %7 : vector<1x512xf32> to vector<8x512xf32>
    %84 = arith.mulf %82, %83 : vector<8x512xf32>
    %c56_54 = arith.constant 56 : index
    %c0_55 = arith.constant 0 : index
    %85 = vector.load %arg8[%c56_54, %c0_55] : memref<72x512xf32, #tpu.memory_space<vmem>>, vector<8x512xf32>
    tpu.vector_store %arg8[%c56_54, %c0_55], %84 {strides = array<i32>} : memref<72x512xf32, #tpu.memory_space<vmem>>, vector<8x512xf32>,
    %c495_i32_56 = arith.constant 495 : i32
    %86 = tpu.dynamic_rotate %54 by %c495_i32_56 dim 1 : vector<8x512xf32>, i32 -> vector<8x512xf32>
    %87 = vector.broadcast %8 : vector<1x512xf32> to vector<8x512xf32>
    %88 = arith.mulf %86, %87 : vector<8x512xf32>
    %c64_57 = arith.constant 64 : index
    %c0_58 = arith.constant 0 : index
    %89 = vector.load %arg8[%c64_57, %c0_58] : memref<72x512xf32, #tpu.memory_space<vmem>>, vector<8x512xf32>
    tpu.vector_store %arg8[%c64_57, %c0_58], %88 {strides = array<i32>} : memref<72x512xf32, #tpu.memory_space<vmem>>, vector<8x512xf32>,
    %c0_59 = arith.constant 0 : index
    %c0_60 = arith.constant 0 : index
    %90 = vector.load %arg8[%c0_59, %c0_60] : memref<72x512xf32, #tpu.memory_space<vmem>>, vector<72x512xf32>
    %cst_61 = arith.constant dense<0.000000e+00> : vector<8x512xf32>
    %91 = tpu.matmul %10, %90, %cst_61 {dimension_numbers = #tpu.dot_dimension_numbers<[1], [0], [0], [1], [0, 0, 1, 1], [], []>} : vector<8x72xf32>, vector<72x512xf32>, vector<8x512xf32> -> vector<8x512xf32>
    %92 = vector.broadcast %12 : vector<8x1xf32> to vector<8x512xf32>
    %93 = arith.addf %91, %92 : vector<8x512xf32>
    %94 = arith.addf %93, %13 : vector<8x512xf32>
    %c0_62 = arith.constant 0 : index
    %c0_63 = arith.constant 0 : index
    %95 = vector.load %arg7[%c0_62, %c0_63] : memref<8x512xf32, #tpu.memory_space<vmem>>, vector<8x512xf32>
    tpu.vector_store %arg7[%c0_62, %c0_63], %94 {strides = array<i32>} : memref<8x512xf32, #tpu.memory_space<vmem>>, vector<8x512xf32>,
    return
  }
  func.func @transform_0(%arg0: i32) -> (i32, i32) {
    %c0_i32 = arith.constant 0 : i32
    %c0_i32_0 = arith.constant 0 : i32
    return %c0_i32, %arg0 : i32, i32
  }
  func.func @transform_1(%arg0: i32) -> (i32, i32) {
    %c0_i32 = arith.constant 0 : i32
    %c0_i32_0 = arith.constant 0 : i32
    %c0_i32_1 = arith.constant 0 : i32
    return %c0_i32, %c0_i32_0 : i32, i32
  }
  func.func @transform_2(%arg0: i32) -> (i32, i32) {
    %c0_i32 = arith.constant 0 : i32
    %c0_i32_0 = arith.constant 0 : i32
    %c0_i32_1 = arith.constant 0 : i32
    return %c0_i32, %c0_i32_0 : i32, i32
  }
  func.func @transform_3(%arg0: i32) -> (i32, i32) {
    %c0_i32 = arith.constant 0 : i32
    %c0_i32_0 = arith.constant 0 : i32
    %c0_i32_1 = arith.constant 0 : i32
    return %c0_i32, %c0_i32_0 : i32, i32
  }
  func.func @transform_4(%arg0: i32) -> (i32, i32) {
    %c0_i32 = arith.constant 0 : i32
    %c0_i32_0 = arith.constant 0 : i32
    %c0_i32_1 = arith.constant 0 : i32
    return %c0_i32, %c0_i32_0 : i32, i32
  }
  func.func @transform_5(%arg0: i32) -> (i32, i32) {
    %c0_i32 = arith.constant 0 : i32
    %c0_i32_0 = arith.constant 0 : i32
    %c0_i32_1 = arith.constant 0 : i32
    return %c0_i32, %c0_i32_0 : i32, i32
  }
  func.func @transform_6(%arg0: i32) -> (i32, i32) {
    %c0_i32 = arith.constant 0 : i32
    %c0_i32_0 = arith.constant 0 : i32
    return %c0_i32, %arg0 : i32, i32
  }
}

</mosaic_0001>

<llo_original>
// kernel: tpu_custom_call.1
$region0: #{tpu_custom_call.1}
  #allocation0 [shape = 'u32[]', space=smem, size = 0x4, offset = 0x4, fixed_abs, tag = 'smem constant byte address 0x4 - core index']
  #allocation1 [shape = 'u32[72,128]{1,0:T(1,128)}', space=vmem, size = 0x9000, scoped, tag = 'internal scratch']
  #allocation2 [shape = 'f32[72,512]{1,0:T(8,128)}', space=vmem, size = 0x24000, scoped, tag = 'scratch operand']
  %s0 = inlined_call_operand.hbm [shape: f32[8,512], index: 0, kind: input, shape index: {}]
  %s1 = inlined_call_operand.hbm [shape: f32[9,512], index: 1, kind: input, shape index: {}]
  %s2 = inlined_call_operand.vmem [shape: f32[8,72], index: 2, kind: input, shape index: {}]
  %s3 = inlined_call_operand.vmem [shape: f32[8,1], index: 3, kind: input, shape index: {}]
  %s4 = inlined_call_operand.vmem [shape: f32[8,72], index: 4, kind: input, shape index: {}]
  %s5 = inlined_call_operand.vmem [shape: f32[8,1], index: 5, kind: input, shape index: {}]
  %s6 = inlined_call_operand.hbm [shape: f32[8,512], index: 6, kind: output, shape index: {}]
  %s7 = sld [smem:[#allocation0]]
  $region42: #{tpu_custom_call.1} parent=0
    _
  %s9 = ssub.s32 1, %s7
  %s10 = scalar_select 0, %s9, %s7
  $region1: #{tpu_custom_call.1} parent=0
    #allocation3 [shape = 'u8[16384]{0}', space=vmem, size = 0x4000, scoped, tag = 'input window, operand 0, single buffered']
    #allocation4 [shape = 's32[1]{0}', space=sflag, size = 0x4, scoped, tag = 'scoped memory for tpu_custom_call.1']
    #allocation5 [shape = 's32[1]{0}', space=sflag, size = 0x4, scoped, tag = 'scoped memory for tpu_custom_call.1']
    #allocation6 [shape = 'u8[32768]{0}', space=vmem, size = 0x8000, scoped, tag = 'input window, operand 1, single buffered']
    #allocation7 [shape = 's32[1]{0}', space=sflag, size = 0x4, scoped, tag = 'scoped memory for tpu_custom_call.1']
    #allocation8 [shape = 'u8[16384]{0}', space=vmem, size = 0x4000, scoped, tag = 'output window, operand 0, single buffered']
    %11 = vsyncpa [#allocation4], 0
    %12 = vsyncpa [#allocation7], 0
    %13 = vsyncpa [#allocation5], 0
    // Predicated region
    $region2: #{tpu_custom_call.1} parent=1 // pred_check
      _
    $region3: #{tpu_custom_call.1} parent=1 // pred_check_branch
      %15 = sbr.rel (0) target = $region5
    $region4: #{tpu_custom_call.1} parent=1 // pred_region
      %17 = vsyncadd [#allocation4], 0
      %s19 = sshll.u32 %s0, 4
      %s20 = int_to_ptr.hbm [resolvable:$true] %s19
      %s21 = sshll.u32 [#allocation3], 4
      %s22 = int_to_ptr.vmem [resolvable:$true] %s21
      %24 = dma.hbm_to_vmem [thread:$0]  %s20, 512, %s22, [#allocation4]
    $region5: #{tpu_custom_call.1} parent=1 // pred_fallthru
      _
    // Predicated region
    $region6: #{tpu_custom_call.1} parent=1 // pred_check
      _
    $region7: #{tpu_custom_call.1} parent=1 // pred_check_branch
      %26 = sbr.rel (0) target = $region9
    $region8: #{tpu_custom_call.1} parent=1 // pred_region
      %28 = vsyncadd [#allocation7], 0
      %s29 = sshll.u32 %s1, 4
      %s30 = int_to_ptr.hbm [resolvable:$true] %s29
      %s31 = sshll.u32 [#allocation6], 4
      %s32 = int_to_ptr.vmem [resolvable:$true] %s31
      %37 = dma.hbm_to_vmem [thread:$0]  %s30, 1024, %s32, [#allocation7], 512, 512, 32
    $region9: #{tpu_custom_call.1} parent=1 // pred_fallthru
      _
    // Predicated region
    $region10: #{tpu_custom_call.1} parent=1 // pred_check
      _
    $region11: #{tpu_custom_call.1} parent=1 // pred_check_branch
      %39 = sbr.rel (0) target = $region13
    $region12: #{tpu_custom_call.1} parent=1 // pred_region
      _
    $region13: #{tpu_custom_call.1} parent=1 // pred_fallthru
      _
    // Predicated region
    $region14: #{tpu_custom_call.1} parent=1 // pred_check
      _
    $region15: #{tpu_custom_call.1} parent=1 // pred_check_branch
      %41 = sbr.rel (0) target = $region17
    $region16: #{tpu_custom_call.1} parent=1 // pred_region
      _
    $region17: #{tpu_custom_call.1} parent=1 // pred_fallthru
      _
    // Predicated region
    $region18: #{tpu_custom_call.1} parent=1 // pred_check
      _
    $region19: #{tpu_custom_call.1} parent=1 // pred_check_branch
      %43 = sbr.rel (0) target = $region21
    $region20: #{tpu_custom_call.1} parent=1 // pred_region
      _
    $region21: #{tpu_custom_call.1} parent=1 // pred_fallthru
      _
    // Predicated region
    $region22: #{tpu_custom_call.1} parent=1 // pred_check
      _
    $region23: #{tpu_custom_call.1} parent=1 // pred_check_branch
      %45 = sbr.rel (0) target = $region25
    $region24: #{tpu_custom_call.1} parent=1 // pred_region
      _
    $region25: #{tpu_custom_call.1} parent=1 // pred_fallthru
      _
    // Predicated region
    $region26: #{tpu_custom_call.1} parent=1 // pred_check
      _
    $region27: #{tpu_custom_call.1} parent=1 // pred_check_branch
      %47 = sbr.rel (0) target = $region29
    $region28: #{tpu_custom_call.1} parent=1 // pred_region
      %49 = dma.done [#allocation4], 512
    $region29: #{tpu_custom_call.1} parent=1 // pred_fallthru
      _
    // Predicated region
    $region30: #{tpu_custom_call.1} parent=1 // pred_check
      _
    $region31: #{tpu_custom_call.1} parent=1 // pred_check_branch
      %51 = sbr.rel (0) target = $region33
    $region32: #{tpu_custom_call.1} parent=1 // pred_region
      %53 = dma.done [#allocation7], 1024
    $region33: #{tpu_custom_call.1} parent=1 // pred_fallthru
      _
    %v54 = vld [vmem:[#allocation6] ss:$8 sm:$0xf]
    %s55 = scalar_lea.vmem [#allocation6], 1
    %v56 = vld [vmem:[%s55] ss:$8 sm:$0xf]
    %s57 = scalar_lea.vmem [#allocation6], 2
    %v58 = vld [vmem:[%s57] ss:$8 sm:$0xf]
    %s59 = scalar_lea.vmem [#allocation6], 3
    %v60 = vld [vmem:[%s59] ss:$8 sm:$0xf]
    %s61 = scalar_lea.vmem [#allocation6], 4
    %v62 = vld [vmem:[%s61] ss:$8 sm:$0xf]
    %s63 = scalar_lea.vmem [#allocation6], 5
    %v64 = vld [vmem:[%s63] ss:$8 sm:$0xf]
    %s65 = scalar_lea.vmem [#allocation6], 6
    %v66 = vld [vmem:[%s65] ss:$8 sm:$0xf]
    %s67 = scalar_lea.vmem [#allocation6], 7
    %v68 = vld [vmem:[%s67] ss:$8 sm:$0xf]
    %s69 = scalar_lea.vmem [#allocation6], 32
    %v70 = vld [vmem:[%s69] ss:$8 sm:$0xf]
    %v71 = vld [vmem:[%s2] sm:$0xff]
    %v72 = vld [vmem:[%s4] sm:$0xff]
    %v73 = vld [vmem:[%s3] sm:$0xff]
    %v74 = vld [vmem:[%s5] sm:$0xff]
    %v75 = vld [vmem:[#allocation3] sm:$0xff]
    %v76 = vld [vmem:[#allocation3 + $0x8] sm:$0xff]
    %v77 = vld [vmem:[#allocation3 + $0x10] sm:$0xff]
    %v78 = vld [vmem:[#allocation3 + $0x18] sm:$0xff]
    %79 = vrot.lane.b32.xlu0 %v75, 17
    %v80 = vpop.permute.xlu0 %79
    %81 = vrot.lane.b32.xlu0 %v76, 17
    %v82 = vpop.permute.xlu0 %81
    %83 = vrot.lane.b32.xlu0 %v77, 17
    %v84 = vpop.permute.xlu0 %83
    %85 = vrot.lane.b32.xlu0 %v78, 17
    %v86 = vpop.permute.xlu0 %85
    %v87 = vlaneseq
    %v88 = vand.u32 %v87, 127
    %vm89 = vcmp.lt.s32.totalorder %v88, 17
    %v90 = vsel %vm89, %v84, %v86
    %v91 = vsel %vm89, %v82, %v84
    %v92 = vsel %vm89, %v80, %v82
    %v93 = vsel %vm89, %v86, %v80
    %v95 = vperm.slane %v54, 0
    %v96 = vperm.slane %v54, 1
    %v97 = vperm.slane %v54, 2
    %v98 = vperm.slane %v54, 3
    %v103 = vmul.f32 %v93, %v95
    %v104 = vmul.f32 %v92, %v96
    %v105 = vmul.f32 %v91, %v97
    %v106 = vmul.f32 %v90, %v98
    %107 = vst [vmem:[#allocation2] sm:$0xff] %v103
    %108 = vst [vmem:[#allocation2 + $0x8] sm:$0xff] %v104
    %109 = vst [vmem:[#allocation2 + $0x10] sm:$0xff] %v105
    %110 = vst [vmem:[#allocation2 + $0x18] sm:$0xff] %v106
    %111 = vrot.lane.b32.xlu0 %v75, 16
    %v112 = vpop.permute.xlu0 %111
    %113 = vrot.lane.b32.xlu0 %v76, 16
    %v114 = vpop.permute.xlu0 %113
    %115 = vrot.lane.b32.xlu0 %v77, 16
    %v116 = vpop.permute.xlu0 %115
    %117 = vrot.lane.b32.xlu0 %v78, 16
    %v118 = vpop.permute.xlu0 %117
    %vm119 = vcmp.lt.s32.totalorder %v88, 16
    %v120 = vsel %vm119, %v116, %v118
    %v121 = vsel %vm119, %v114, %v116
    %v122 = vsel %vm119, %v112, %v114
    %v123 = vsel %vm119, %v118, %v112
    %v125 = vperm.slane %v56, 0
    %v126 = vperm.slane %v56, 1
    %v127 = vperm.slane %v56, 2
    %v128 = vperm.slane %v56, 3
    %v133 = vmul.f32 %v123, %v125
    %v134 = vmul.f32 %v122, %v126
    %v135 = vmul.f32 %v121, %v127
    %v136 = vmul.f32 %v120, %v128
    %137 = vst [vmem:[#allocation2 + $0x20] sm:$0xff] %v133
    %138 = vst [vmem:[#allocation2 + $0x28] sm:$0xff] %v134
    %139 = vst [vmem:[#allocation2 + $0x30] sm:$0xff] %v135
    %140 = vst [vmem:[#allocation2 + $0x38] sm:$0xff] %v136
    %141 = vrot.lane.b32.xlu0 %v75, 15
    %v142 = vpop.permute.xlu0 %141
    %143 = vrot.lane.b32.xlu0 %v76, 15
    %v144 = vpop.permute.xlu0 %143
    %145 = vrot.lane.b32.xlu0 %v77, 15
    %v146 = vpop.permute.xlu0 %145
    %147 = vrot.lane.b32.xlu0 %v78, 15
    %v148 = vpop.permute.xlu0 %147
    %vm149 = vcmp.lt.s32.totalorder %v88, 15
    %v150 = vsel %vm149, %v146, %v148
    %v151 = vsel %vm149, %v144, %v146
    %v152 = vsel %vm149, %v142, %v144
    %v153 = vsel %vm149, %v148, %v142
    %v155 = vperm.slane %v58, 0
    %v156 = vperm.slane %v58, 1
    %v157 = vperm.slane %v58, 2
    %v158 = vperm.slane %v58, 3
    %v163 = vmul.f32 %v153, %v155
    %v164 = vmul.f32 %v152, %v156
    %v165 = vmul.f32 %v151, %v157
    %v166 = vmul.f32 %v150, %v158
    %167 = vst [vmem:[#allocation2 + $0x40] sm:$0xff] %v163
    %168 = vst [vmem:[#allocation2 + $0x48] sm:$0xff] %v164
    %169 = vst [vmem:[#allocation2 + $0x50] sm:$0xff] %v165
    %170 = vst [vmem:[#allocation2 + $0x58] sm:$0xff] %v166
    %171 = vrot.lane.b32.xlu0 %v75, 1
    %v172 = vpop.permute.xlu0 %171
    %173 = vrot.lane.b32.xlu0 %v76, 1
    %v174 = vpop.permute.xlu0 %173
    %175 = vrot.lane.b32.xlu0 %v77, 1
    %v176 = vpop.permute.xlu0 %175
    %177 = vrot.lane.b32.xlu0 %v78, 1
    %v178 = vpop.permute.xlu0 %177
    %vm179 = vcmp.lt.s32.totalorder %v88, 1
    %v180 = vsel %vm179, %v176, %v178
    %v181 = vsel %vm179, %v174, %v176
    %v182 = vsel %vm179, %v172, %v174
    %v183 = vsel %vm179, %v178, %v172
    %v185 = vperm.slane %v60, 0
    %v186 = vperm.slane %v60, 1
    %v187 = vperm.slane %v60, 2
    %v188 = vperm.slane %v60, 3
    %v193 = vmul.f32 %v183, %v185
    %v194 = vmul.f32 %v182, %v186
    %v195 = vmul.f32 %v181, %v187
    %v196 = vmul.f32 %v180, %v188
    %197 = vst [vmem:[#allocation2 + $0x60] sm:$0xff] %v193
    %198 = vst [vmem:[#allocation2 + $0x68] sm:$0xff] %v194
    %199 = vst [vmem:[#allocation2 + $0x70] sm:$0xff] %v195
    %200 = vst [vmem:[#allocation2 + $0x78] sm:$0xff] %v196
    %v202 = vperm.slane %v62, 0
    %v203 = vperm.slane %v62, 1
    %v204 = vperm.slane %v62, 2
    %v205 = vperm.slane %v62, 3
    %v210 = vmul.f32 %v75, %v202
    %v211 = vmul.f32 %v76, %v203
    %v212 = vmul.f32 %v77, %v204
    %v213 = vmul.f32 %v78, %v205
    %214 = vst [vmem:[#allocation2 + $0x80] sm:$0xff] %v210
    %215 = vst [vmem:[#allocation2 + $0x88] sm:$0xff] %v211
    %216 = vst [vmem:[#allocation2 + $0x90] sm:$0xff] %v212
    %217 = vst [vmem:[#allocation2 + $0x98] sm:$0xff] %v213
    %218 = vrot.lane.b32.xlu0 %v75, 127
    %v219 = vpop.permute.xlu0 %218
    %220 = vrot.lane.b32.xlu0 %v76, 127
    %v221 = vpop.permute.xlu0 %220
    %222 = vrot.lane.b32.xlu0 %v77, 127
    %v223 = vpop.permute.xlu0 %222
    %224 = vrot.lane.b32.xlu0 %v78, 127
    %v225 = vpop.permute.xlu0 %224
    %vm226 = vcmp.lt.s32.totalorder %v88, 127
    %v227 = vsel %vm226, %v223, %v225
    %v228 = vsel %vm226, %v221, %v223
    %v229 = vsel %vm226, %v219, %v221
    %v230 = vsel %vm226, %v225, %v219
    %v232 = vperm.slane %v64, 0
    %v233 = vperm.slane %v64, 1
    %v234 = vperm.slane %v64, 2
    %v235 = vperm.slane %v64, 3
    %v240 = vmul.f32 %v229, %v232
    %v241 = vmul.f32 %v228, %v233
    %v242 = vmul.f32 %v227, %v234
    %v243 = vmul.f32 %v230, %v235
    %244 = vst [vmem:[#allocation2 + $0xa0] sm:$0xff] %v240
    %245 = vst [vmem:[#allocation2 + $0xa8] sm:$0xff] %v241
    %246 = vst [vmem:[#allocation2 + $0xb0] sm:$0xff] %v242
    %247 = vst [vmem:[#allocation2 + $0xb8] sm:$0xff] %v243
    %248 = vrot.lane.b32.xlu0 %v75, 113
    %v249 = vpop.permute.xlu0 %248
    %250 = vrot.lane.b32.xlu0 %v76, 113
    %v251 = vpop.permute.xlu0 %250
    %252 = vrot.lane.b32.xlu0 %v77, 113
    %v253 = vpop.permute.xlu0 %252
    %254 = vrot.lane.b32.xlu0 %v78, 113
    %v255 = vpop.permute.xlu0 %254
    %vm256 = vcmp.lt.s32.totalorder %v88, 113
    %v257 = vsel %vm256, %v253, %v255
    %v258 = vsel %vm256, %v251, %v253
    %v259 = vsel %vm256, %v249, %v251
    %v260 = vsel %vm256, %v255, %v249
    %v262 = vperm.slane %v66, 0
    %v263 = vperm.slane %v66, 1
    %v264 = vperm.slane %v66, 2
    %v265 = vperm.slane %v66, 3
    %v270 = vmul.f32 %v259, %v262
    %v271 = vmul.f32 %v258, %v263
    %v272 = vmul.f32 %v257, %v264
    %v273 = vmul.f32 %v260, %v265
    %274 = vst [vmem:[#allocation2 + $0xc0] sm:$0xff] %v270
    %275 = vst [vmem:[#allocation2 + $0xc8] sm:$0xff] %v271
    %276 = vst [vmem:[#allocation2 + $0xd0] sm:$0xff] %v272
    %277 = vst [vmem:[#allocation2 + $0xd8] sm:$0xff] %v273
    %278 = vrot.lane.b32.xlu0 %v75, 112
    %v279 = vpop.permute.xlu0 %278
    %280 = vrot.lane.b32.xlu0 %v76, 112
    %v281 = vpop.permute.xlu0 %280
    %282 = vrot.lane.b32.xlu0 %v77, 112
    %v283 = vpop.permute.xlu0 %282
    %284 = vrot.lane.b32.xlu0 %v78, 112
    %v285 = vpop.permute.xlu0 %284
    %vm286 = vcmp.lt.s32.totalorder %v88, 112
    %v287 = vsel %vm286, %v283, %v285
    %v288 = vsel %vm286, %v281, %v283
    %v289 = vsel %vm286, %v279, %v281
    %v290 = vsel %vm286, %v285, %v279
    %v292 = vperm.slane %v68, 0
    %v293 = vperm.slane %v68, 1
    %v294 = vperm.slane %v68, 2
    %v295 = vperm.slane %v68, 3
    %v300 = vmul.f32 %v289, %v292
    %v301 = vmul.f32 %v288, %v293
    %v302 = vmul.f32 %v287, %v294
    %v303 = vmul.f32 %v290, %v295
    %304 = vst [vmem:[#allocation2 + $0xe0] sm:$0xff] %v300
    %305 = vst [vmem:[#allocation2 + $0xe8] sm:$0xff] %v301
    %306 = vst [vmem:[#allocation2 + $0xf0] sm:$0xff] %v302
    %307 = vst [vmem:[#allocation2 + $0xf8] sm:$0xff] %v303
    %308 = vrot.lane.b32.xlu0 %v75, 111
    %v309 = vpop.permute.xlu0 %308
    %310 = vrot.lane.b32.xlu0 %v76, 111
    %v311 = vpop.permute.xlu0 %310
    %312 = vrot.lane.b32.xlu0 %v77, 111
    %v313 = vpop.permute.xlu0 %312
    %314 = vrot.lane.b32.xlu0 %v78, 111
    %v315 = vpop.permute.xlu0 %314
    %vm316 = vcmp.lt.s32.totalorder %v88, 111
    %v317 = vsel %vm316, %v313, %v315
    %v318 = vsel %vm316, %v311, %v313
    %v319 = vsel %vm316, %v309, %v311
    %v320 = vsel %vm316, %v315, %v309
    %v322 = vperm.slane %v70, 0
    %v323 = vperm.slane %v70, 1
    %v324 = vperm.slane %v70, 2
    %v325 = vperm.slane %v70, 3
    %v330 = vmul.f32 %v319, %v322
    %v331 = vmul.f32 %v318, %v323
    %v332 = vmul.f32 %v317, %v324
    %v333 = vmul.f32 %v320, %v325
    %334 = vst [vmem:[#allocation2 + $0x100] sm:$0xff] %v330
    %335 = vst [vmem:[#allocation2 + $0x108] sm:$0xff] %v331
    %336 = vst [vmem:[#allocation2 + $0x110] sm:$0xff] %v332
    %337 = vst [vmem:[#allocation2 + $0x118] sm:$0xff] %v333
    %v338 = vld [vmem:[#allocation2] sm:$0xff]
    %v339 = vld [vmem:[#allocation2 + $0x8] sm:$0xff]
    %v340 = vld [vmem:[#allocation2 + $0x10] sm:$0xff]
    %v341 = vld [vmem:[#allocation2 + $0x18] sm:$0xff]
    %v342 = vld [vmem:[#allocation2 + $0x20] sm:$0xff]
    %v343 = vld [vmem:[#allocation2 + $0x28] sm:$0xff]
    %v344 = vld [vmem:[#allocation2 + $0x30] sm:$0xff]
    %v345 = vld [vmem:[#allocation2 + $0x38] sm:$0xff]
    %v346 = vld [vmem:[#allocation2 + $0x40] sm:$0xff]
    %v347 = vld [vmem:[#allocation2 + $0x48] sm:$0xff]
    %v348 = vld [vmem:[#allocation2 + $0x50] sm:$0xff]
    %v349 = vld [vmem:[#allocation2 + $0x58] sm:$0xff]
    %v350 = vld [vmem:[#allocation2 + $0x60] sm:$0xff]
    %v351 = vld [vmem:[#allocation2 + $0x68] sm:$0xff]
    %v352 = vld [vmem:[#allocation2 + $0x70] sm:$0xff]
    %v353 = vld [vmem:[#allocation2 + $0x78] sm:$0xff]
    %v354 = vld [vmem:[#allocation2 + $0x80] sm:$0xff]
    %v355 = vld [vmem:[#allocation2 + $0x88] sm:$0xff]
    %v356 = vld [vmem:[#allocation2 + $0x90] sm:$0xff]
    %v357 = vld [vmem:[#allocation2 + $0x98] sm:$0xff]
    %v358 = vld [vmem:[#allocation2 + $0xa0] sm:$0xff]
    %v359 = vld [vmem:[#allocation2 + $0xa8] sm:$0xff]
    %v360 = vld [vmem:[#allocation2 + $0xb0] sm:$0xff]
    %v361 = vld [vmem:[#allocation2 + $0xb8] sm:$0xff]
    %v362 = vld [vmem:[#allocation2 + $0xc0] sm:$0xff]
    %v363 = vld [vmem:[#allocation2 + $0xc8] sm:$0xff]
    %v364 = vld [vmem:[#allocation2 + $0xd0] sm:$0xff]
    %v365 = vld [vmem:[#allocation2 + $0xd8] sm:$0xff]
    %v366 = vld [vmem:[#allocation2 + $0xe0] sm:$0xff]
    %v367 = vld [vmem:[#allocation2 + $0xe8] sm:$0xff]
    %v368 = vld [vmem:[#allocation2 + $0xf0] sm:$0xff]
    %v369 = vld [vmem:[#allocation2 + $0xf8] sm:$0xff]
    %v370 = vld [vmem:[#allocation2 + $0x100] sm:$0xff]
    %v371 = vld [vmem:[#allocation2 + $0x108] sm:$0xff]
    %v372 = vld [vmem:[#allocation2 + $0x110] sm:$0xff]
    %v373 = vld [vmem:[#allocation2 + $0x118] sm:$0xff]
    %375 = vset.pattern.permute.xlu0 0
    %376 = vperm.xlu0 %375, %v73
    %v377 = vpop.permute.xlu0 %376
    %vm379 = vcmask 588800
    %v381 = vsel %vm379, %v71, 0
    %383 = vmatpush.msra.mxu0 0.0
    %384 = vmatpush.msra.mxu0 0.0
    %385 = vmatpush.msra.mxu0 0.0
    %386 = vmatpush.msra.mxu0 0.0
    %387 = vmatpush.msra.mxu0 0.0
    %388 = vmatpush.msra.mxu0 0.0
    %389 = vmatpush.msra.mxu0 0.0
    %390 = vmatpush.msra.mxu0 %v370
    %391 = vmatpush.msra.mxu0 %v366
    %392 = vmatpush.msra.mxu0 %v362
    %393 = vmatpush.msra.mxu0 %v358
    %394 = vmatpush.msra.mxu0 %v354
    %395 = vmatpush.msra.mxu0 %v350
    %396 = vmatpush.msra.mxu0 %v346
    %397 = vmatpush.msra.mxu0 %v342
    %398 = vmatpush.msra.mxu0 %v338
    %399 = vmatmul.f32.gmra.mxu0 %v381
    %v400 = vpop.f32.mrf.mxu0
    %v401 = vadd.f32 %v377, %v400
    %402 = vdwg.mxu0
    %403 = vmatpush.msra.mxu0 0.0
    %404 = vmatpush.msra.mxu0 0.0
    %405 = vmatpush.msra.mxu0 0.0
    %406 = vmatpush.msra.mxu0 0.0
    %407 = vmatpush.msra.mxu0 0.0
    %408 = vmatpush.msra.mxu0 0.0
    %409 = vmatpush.msra.mxu0 0.0
    %410 = vmatpush.msra.mxu0 %v371
    %411 = vmatpush.msra.mxu0 %v367
    %412 = vmatpush.msra.mxu0 %v363
    %413 = vmatpush.msra.mxu0 %v359
    %414 = vmatpush.msra.mxu0 %v355
    %415 = vmatpush.msra.mxu0 %v351
    %416 = vmatpush.msra.mxu0 %v347
    %417 = vmatpush.msra.mxu0 %v343
    %418 = vmatpush.msra.mxu0 %v339
    %419 = vmatmul.f32.gmra.mxu0 %v381
    %v420 = vpop.f32.mrf.mxu0
    %v421 = vadd.f32 %v377, %v420
    %422 = vdwg.mxu0
    %423 = vmatpush.msra.mxu0 0.0
    %424 = vmatpush.msra.mxu0 0.0
    %425 = vmatpush.msra.mxu0 0.0
    %426 = vmatpush.msra.mxu0 0.0
    %427 = vmatpush.msra.mxu0 0.0
    %428 = vmatpush.msra.mxu0 0.0
    %429 = vmatpush.msra.mxu0 0.0
    %430 = vmatpush.msra.mxu0 %v372
    %431 = vmatpush.msra.mxu0 %v368
    %432 = vmatpush.msra.mxu0 %v364
    %433 = vmatpush.msra.mxu0 %v360
    %434 = vmatpush.msra.mxu0 %v356
    %435 = vmatpush.msra.mxu0 %v352
    %436 = vmatpush.msra.mxu0 %v348
    %437 = vmatpush.msra.mxu0 %v344
    %438 = vmatpush.msra.mxu0 %v340
    %439 = vmatmul.f32.gmra.mxu0 %v381
    %v440 = vpop.f32.mrf.mxu0
    %v441 = vadd.f32 %v377, %v440
    %442 = vdwg.mxu0
    %443 = vmatpush.msra.mxu0 0.0
    %444 = vmatpush.msra.mxu0 0.0
    %445 = vmatpush.msra.mxu0 0.0
    %446 = vmatpush.msra.mxu0 0.0
    %447 = vmatpush.msra.mxu0 0.0
    %448 = vmatpush.msra.mxu0 0.0
    %449 = vmatpush.msra.mxu0 0.0
    %450 = vmatpush.msra.mxu0 %v373
    %451 = vmatpush.msra.mxu0 %v369
    %452 = vmatpush.msra.mxu0 %v365
    %453 = vmatpush.msra.mxu0 %v361
    %454 = vmatpush.msra.mxu0 %v357
    %455 = vmatpush.msra.mxu0 %v353
    %456 = vmatpush.msra.mxu0 %v349
    %457 = vmatpush.msra.mxu0 %v345
    %458 = vmatpush.msra.mxu0 %v341
    %459 = vmatmul.f32.gmra.mxu0 %v381
    %v460 = vpop.f32.mrf.mxu0
    %v461 = vadd.f32 %v377, %v460
    %462 = vdwg.mxu0
    %v463 = vmax.f32 %v401, 0.0
    %v464 = vmax.f32 %v421, 0.0
    %v465 = vmax.f32 %v441, 0.0
    %v466 = vmax.f32 %v461, 0.0
    %467 = vrot.lane.b32.xlu0 %v463, 17
    %v468 = vpop.permute.xlu0 %467
    %469 = vrot.lane.b32.xlu0 %v464, 17
    %v470 = vpop.permute.xlu0 %469
    %471 = vrot.lane.b32.xlu0 %v465, 17
    %v472 = vpop.permute.xlu0 %471
    %473 = vrot.lane.b32.xlu0 %v466, 17
    %v474 = vpop.permute.xlu0 %473
    %v475 = vsel %vm89, %v472, %v474
    %v476 = vsel %vm89, %v470, %v472
    %v477 = vsel %vm89, %v468, %v470
    %v478 = vsel %vm89, %v474, %v468
    %v479 = vmul.f32 %v478, %v95
    %v480 = vmul.f32 %v477, %v96
    %v481 = vmul.f32 %v476, %v97
    %v482 = vmul.f32 %v475, %v98
    %483 = vst [vmem:[#allocation2] sm:$0xff] %v479
    %484 = vst [vmem:[#allocation2 + $0x8] sm:$0xff] %v480
    %485 = vst [vmem:[#allocation2 + $0x10] sm:$0xff] %v481
    %486 = vst [vmem:[#allocation2 + $0x18] sm:$0xff] %v482
    %487 = vrot.lane.b32.xlu0 %v463, 16
    %v488 = vpop.permute.xlu0 %487
    %489 = vrot.lane.b32.xlu0 %v464, 16
    %v490 = vpop.permute.xlu0 %489
    %491 = vrot.lane.b32.xlu0 %v465, 16
    %v492 = vpop.permute.xlu0 %491
    %493 = vrot.lane.b32.xlu0 %v466, 16
    %v494 = vpop.permute.xlu0 %493
    %v495 = vsel %vm119, %v492, %v494
    %v496 = vsel %vm119, %v490, %v492
    %v497 = vsel %vm119, %v488, %v490
    %v498 = vsel %vm119, %v494, %v488
    %v499 = vmul.f32 %v498, %v125
    %v500 = vmul.f32 %v497, %v126
    %v501 = vmul.f32 %v496, %v127
    %v502 = vmul.f32 %v495, %v128
    %503 = vst [vmem:[#allocation2 + $0x20] sm:$0xff] %v499
    %504 = vst [vmem:[#allocation2 + $0x28] sm:$0xff] %v500
    %505 = vst [vmem:[#allocation2 + $0x30] sm:$0xff] %v501
    %506 = vst [vmem:[#allocation2 + $0x38] sm:$0xff] %v502
    %507 = vrot.lane.b32.xlu0 %v463, 15
    %v508 = vpop.permute.xlu0 %507
    %509 = vrot.lane.b32.xlu0 %v464, 15
    %v510 = vpop.permute.xlu0 %509
    %511 = vrot.lane.b32.xlu0 %v465, 15
    %v512 = vpop.permute.xlu0 %511
    %513 = vrot.lane.b32.xlu0 %v466, 15
    %v514 = vpop.permute.xlu0 %513
    %v515 = vsel %vm149, %v512, %v514
    %v516 = vsel %vm149, %v510, %v512
    %v517 = vsel %vm149, %v508, %v510
    %v518 = vsel %vm149, %v514, %v508
    %v519 = vmul.f32 %v518, %v155
    %v520 = vmul.f32 %v517, %v156
    %v521 = vmul.f32 %v516, %v157
    %v522 = vmul.f32 %v515, %v158
    %523 = vst [vmem:[#allocation2 + $0x40] sm:$0xff] %v519
    %524 = vst [vmem:[#allocation2 + $0x48] sm:$0xff] %v520
    %525 = vst [vmem:[#allocation2 + $0x50] sm:$0xff] %v521
    %526 = vst [vmem:[#allocation2 + $0x58] sm:$0xff] %v522
    %527 = vrot.lane.b32.xlu0 %v463, 1
    %v528 = vpop.permute.xlu0 %527
    %529 = vrot.lane.b32.xlu0 %v464, 1
    %v530 = vpop.permute.xlu0 %529
    %531 = vrot.lane.b32.xlu0 %v465, 1
    %v532 = vpop.permute.xlu0 %531
    %533 = vrot.lane.b32.xlu0 %v466, 1
    %v534 = vpop.permute.xlu0 %533
    %v535 = vsel %vm179, %v532, %v534
    %v536 = vsel %vm179, %v530, %v532
    %v537 = vsel %vm179, %v528, %v530
    %v538 = vsel %vm179, %v534, %v528
    %v539 = vmul.f32 %v538, %v185
    %v540 = vmul.f32 %v537, %v186
    %v541 = vmul.f32 %v536, %v187
    %v542 = vmul.f32 %v535, %v188
    %543 = vst [vmem:[#allocation2 + $0x60] sm:$0xff] %v539
    %544 = vst [vmem:[#allocation2 + $0x68] sm:$0xff] %v540
    %545 = vst [vmem:[#allocation2 + $0x70] sm:$0xff] %v541
    %546 = vst [vmem:[#allocation2 + $0x78] sm:$0xff] %v542
    %v547 = vmul.f32 %v463, %v202
    %v548 = vmul.f32 %v464, %v203
    %v549 = vmul.f32 %v465, %v204
    %v550 = vmul.f32 %v466, %v205
    %551 = vst [vmem:[#allocation2 + $0x80] sm:$0xff] %v547
    %552 = vst [vmem:[#allocation2 + $0x88] sm:$0xff] %v548
    %553 = vst [vmem:[#allocation2 + $0x90] sm:$0xff] %v549
    %554 = vst [vmem:[#allocation2 + $0x98] sm:$0xff] %v550
    %555 = vrot.lane.b32.xlu0 %v463, 127
    %v556 = vpop.permute.xlu0 %555
    %557 = vrot.lane.b32.xlu0 %v464, 127
    %v558 = vpop.permute.xlu0 %557
    %559 = vrot.lane.b32.xlu0 %v465, 127
    %v560 = vpop.permute.xlu0 %559
    %561 = vrot.lane.b32.xlu0 %v466, 127
    %v562 = vpop.permute.xlu0 %561
    %v563 = vsel %vm226, %v560, %v562
    %v564 = vsel %vm226, %v558, %v560
    %v565 = vsel %vm226, %v556, %v558
    %v566 = vsel %vm226, %v562, %v556
    %v567 = vmul.f32 %v565, %v232
    %v568 = vmul.f32 %v564, %v233
    %v569 = vmul.f32 %v563, %v234
    %v570 = vmul.f32 %v566, %v235
    %571 = vst [vmem:[#allocation2 + $0xa0] sm:$0xff] %v567
    %572 = vst [vmem:[#allocation2 + $0xa8] sm:$0xff] %v568
    %573 = vst [vmem:[#allocation2 + $0xb0] sm:$0xff] %v569
    %574 = vst [vmem:[#allocation2 + $0xb8] sm:$0xff] %v570
    %575 = vrot.lane.b32.xlu0 %v463, 113
    %v576 = vpop.permute.xlu0 %575
    %577 = vrot.lane.b32.xlu0 %v464, 113
    %v578 = vpop.permute.xlu0 %577
    %579 = vrot.lane.b32.xlu0 %v465, 113
    %v580 = vpop.permute.xlu0 %579
    %581 = vrot.lane.b32.xlu0 %v466, 113
    %v582 = vpop.permute.xlu0 %581
    %v583 = vsel %vm256, %v580, %v582
    %v584 = vsel %vm256, %v578, %v580
    %v585 = vsel %vm256, %v576, %v578
    %v586 = vsel %vm256, %v582, %v576
    %v587 = vmul.f32 %v585, %v262
    %v588 = vmul.f32 %v584, %v263
    %v589 = vmul.f32 %v583, %v264
    %v590 = vmul.f32 %v586, %v265
    %591 = vst [vmem:[#allocation2 + $0xc0] sm:$0xff] %v587
    %592 = vst [vmem:[#allocation2 + $0xc8] sm:$0xff] %v588
    %593 = vst [vmem:[#allocation2 + $0xd0] sm:$0xff] %v589
    %594 = vst [vmem:[#allocation2 + $0xd8] sm:$0xff] %v590
    %595 = vrot.lane.b32.xlu0 %v463, 112
    %v596 = vpop.permute.xlu0 %595
    %597 = vrot.lane.b32.xlu0 %v464, 112
    %v598 = vpop.permute.xlu0 %597
    %599 = vrot.lane.b32.xlu0 %v465, 112
    %v600 = vpop.permute.xlu0 %599
    %601 = vrot.lane.b32.xlu0 %v466, 112
    %v602 = vpop.permute.xlu0 %601
    %v603 = vsel %vm286, %v600, %v602
    %v604 = vsel %vm286, %v598, %v600
    %v605 = vsel %vm286, %v596, %v598
    %v606 = vsel %vm286, %v602, %v596
    %v607 = vmul.f32 %v605, %v292
    %v608 = vmul.f32 %v604, %v293
    %v609 = vmul.f32 %v603, %v294
    %v610 = vmul.f32 %v606, %v295
    %611 = vst [vmem:[#allocation2 + $0xe0] sm:$0xff] %v607
    %612 = vst [vmem:[#allocation2 + $0xe8] sm:$0xff] %v608
    %613 = vst [vmem:[#allocation2 + $0xf0] sm:$0xff] %v609
    %614 = vst [vmem:[#allocation2 + $0xf8] sm:$0xff] %v610
    %615 = vrot.lane.b32.xlu0 %v463, 111
    %v616 = vpop.permute.xlu0 %615
    %617 = vrot.lane.b32.xlu0 %v464, 111
    %v618 = vpop.permute.xlu0 %617
    %619 = vrot.lane.b32.xlu0 %v465, 111
    %v620 = vpop.permute.xlu0 %619
    %621 = vrot.lane.b32.xlu0 %v466, 111
    %v622 = vpop.permute.xlu0 %621
    %v623 = vsel %vm316, %v620, %v622
    %v624 = vsel %vm316, %v618, %v620
    %v625 = vsel %vm316, %v616, %v618
    %v626 = vsel %vm316, %v622, %v616
    %v627 = vmul.f32 %v625, %v322
    %v628 = vmul.f32 %v624, %v323
    %v629 = vmul.f32 %v623, %v324
    %v630 = vmul.f32 %v626, %v325
    %631 = vst [vmem:[#allocation2 + $0x100] sm:$0xff] %v627
    %632 = vst [vmem:[#allocation2 + $0x108] sm:$0xff] %v628
    %633 = vst [vmem:[#allocation2 + $0x110] sm:$0xff] %v629
    %634 = vst [vmem:[#allocation2 + $0x118] sm:$0xff] %v630
    %v635 = vld [vmem:[#allocation2] sm:$0xff]
    %v636 = vld [vmem:[#allocation2 + $0x8] sm:$0xff]
    %v637 = vld [vmem:[#allocation2 + $0x10] sm:$0xff]
    %v638 = vld [vmem:[#allocation2 + $0x18] sm:$0xff]
    %v639 = vld [vmem:[#allocation2 + $0x20] sm:$0xff]
    %v640 = vld [vmem:[#allocation2 + $0x28] sm:$0xff]
    %v641 = vld [vmem:[#allocation2 + $0x30] sm:$0xff]
    %v642 = vld [vmem:[#allocation2 + $0x38] sm:$0xff]
    %v643 = vld [vmem:[#allocation2 + $0x40] sm:$0xff]
    %v644 = vld [vmem:[#allocation2 + $0x48] sm:$0xff]
    %v645 = vld [vmem:[#allocation2 + $0x50] sm:$0xff]
    %v646 = vld [vmem:[#allocation2 + $0x58] sm:$0xff]
    %v647 = vld [vmem:[#allocation2 + $0x60] sm:$0xff]
    %v648 = vld [vmem:[#allocation2 + $0x68] sm:$0xff]
    %v649 = vld [vmem:[#allocation2 + $0x70] sm:$0xff]
    %v650 = vld [vmem:[#allocation2 + $0x78] sm:$0xff]
    %v651 = vld [vmem:[#allocation2 + $0x80] sm:$0xff]
    %v652 = vld [vmem:[#allocation2 + $0x88] sm:$0xff]
    %v653 = vld [vmem:[#allocation2 + $0x90] sm:$0xff]
    %v654 = vld [vmem:[#allocation2 + $0x98] sm:$0xff]
    %v655 = vld [vmem:[#allocation2 + $0xa0] sm:$0xff]
    %v656 = vld [vmem:[#allocation2 + $0xa8] sm:$0xff]
    %v657 = vld [vmem:[#allocation2 + $0xb0] sm:$0xff]
    %v658 = vld [vmem:[#allocation2 + $0xb8] sm:$0xff]
    %v659 = vld [vmem:[#allocation2 + $0xc0] sm:$0xff]
    %v660 = vld [vmem:[#allocation2 + $0xc8] sm:$0xff]
    %v661 = vld [vmem:[#allocation2 + $0xd0] sm:$0xff]
    %v662 = vld [vmem:[#allocation2 + $0xd8] sm:$0xff]
    %v663 = vld [vmem:[#allocation2 + $0xe0] sm:$0xff]
    %v664 = vld [vmem:[#allocation2 + $0xe8] sm:$0xff]
    %v665 = vld [vmem:[#allocation2 + $0xf0] sm:$0xff]
    %v666 = vld [vmem:[#allocation2 + $0xf8] sm:$0xff]
    %v667 = vld [vmem:[#allocation2 + $0x100] sm:$0xff]
    %v668 = vld [vmem:[#allocation2 + $0x108] sm:$0xff]
    %v669 = vld [vmem:[#allocation2 + $0x110] sm:$0xff]
    %v670 = vld [vmem:[#allocation2 + $0x118] sm:$0xff]
    %672 = vset.pattern.permute.xlu0 0
    %673 = vperm.xlu0 %672, %v74
    %v674 = vpop.permute.xlu0 %673
    %v677 = vsel %vm379, %v72, 0
    %679 = vmatpush.msra.mxu0 0.0
    %680 = vmatpush.msra.mxu0 0.0
    %681 = vmatpush.msra.mxu0 0.0
    %682 = vmatpush.msra.mxu0 0.0
    %683 = vmatpush.msra.mxu0 0.0
    %684 = vmatpush.msra.mxu0 0.0
    %685 = vmatpush.msra.mxu0 0.0
    %686 = vmatpush.msra.mxu0 %v667
    %687 = vmatpush.msra.mxu0 %v663
    %688 = vmatpush.msra.mxu0 %v659
    %689 = vmatpush.msra.mxu0 %v655
    %690 = vmatpush.msra.mxu0 %v651
    %691 = vmatpush.msra.mxu0 %v647
    %692 = vmatpush.msra.mxu0 %v643
    %693 = vmatpush.msra.mxu0 %v639
    %694 = vmatpush.msra.mxu0 %v635
    %695 = vmatmul.f32.gmra.mxu0 %v677
    %v696 = vpop.f32.mrf.mxu0
    %v697 = vadd.f32 %v674, %v696
    %698 = vdwg.mxu0
    %699 = vmatpush.msra.mxu0 0.0
    %700 = vmatpush.msra.mxu0 0.0
    %701 = vmatpush.msra.mxu0 0.0
    %702 = vmatpush.msra.mxu0 0.0
    %703 = vmatpush.msra.mxu0 0.0
    %704 = vmatpush.msra.mxu0 0.0
    %705 = vmatpush.msra.mxu0 0.0
    %706 = vmatpush.msra.mxu0 %v668
    %707 = vmatpush.msra.mxu0 %v664
    %708 = vmatpush.msra.mxu0 %v660
    %709 = vmatpush.msra.mxu0 %v656
    %710 = vmatpush.msra.mxu0 %v652
    %711 = vmatpush.msra.mxu0 %v648
    %712 = vmatpush.msra.mxu0 %v644
    %713 = vmatpush.msra.mxu0 %v640
    %714 = vmatpush.msra.mxu0 %v636
    %715 = vmatmul.f32.gmra.mxu0 %v677
    %v716 = vpop.f32.mrf.mxu0
    %v717 = vadd.f32 %v674, %v716
    %718 = vdwg.mxu0
    %719 = vmatpush.msra.mxu0 0.0
    %720 = vmatpush.msra.mxu0 0.0
    %721 = vmatpush.msra.mxu0 0.0
    %722 = vmatpush.msra.mxu0 0.0
    %723 = vmatpush.msra.mxu0 0.0
    %724 = vmatpush.msra.mxu0 0.0
    %725 = vmatpush.msra.mxu0 0.0
    %726 = vmatpush.msra.mxu0 %v669
    %727 = vmatpush.msra.mxu0 %v665
    %728 = vmatpush.msra.mxu0 %v661
    %729 = vmatpush.msra.mxu0 %v657
    %730 = vmatpush.msra.mxu0 %v653
    %731 = vmatpush.msra.mxu0 %v649
    %732 = vmatpush.msra.mxu0 %v645
    %733 = vmatpush.msra.mxu0 %v641
    %734 = vmatpush.msra.mxu0 %v637
    %735 = vmatmul.f32.gmra.mxu0 %v677
    %v736 = vpop.f32.mrf.mxu0
    %v737 = vadd.f32 %v674, %v736
    %738 = vdwg.mxu0
    %739 = vmatpush.msra.mxu0 0.0
    %740 = vmatpush.msra.mxu0 0.0
    %741 = vmatpush.msra.mxu0 0.0
    %742 = vmatpush.msra.mxu0 0.0
    %743 = vmatpush.msra.mxu0 0.0
    %744 = vmatpush.msra.mxu0 0.0
    %745 = vmatpush.msra.mxu0 0.0
    %746 = vmatpush.msra.mxu0 %v670
    %747 = vmatpush.msra.mxu0 %v666
    %748 = vmatpush.msra.mxu0 %v662
    %749 = vmatpush.msra.mxu0 %v658
    %750 = vmatpush.msra.mxu0 %v654
    %751 = vmatpush.msra.mxu0 %v650
    %752 = vmatpush.msra.mxu0 %v646
    %753 = vmatpush.msra.mxu0 %v642
    %754 = vmatpush.msra.mxu0 %v638
    %755 = vmatmul.f32.gmra.mxu0 %v677
    %v756 = vpop.f32.mrf.mxu0
    %v757 = vadd.f32 %v674, %v756
    %758 = vdwg.mxu0
    %v759 = vadd.f32 %v697, %v75
    %v760 = vadd.f32 %v717, %v76
    %v761 = vadd.f32 %v737, %v77
    %v762 = vadd.f32 %v757, %v78
    %763 = vst [vmem:[#allocation8] sm:$0xff] %v759
    %764 = vst [vmem:[#allocation8 + $0x8] sm:$0xff] %v760
    %765 = vst [vmem:[#allocation8 + $0x10] sm:$0xff] %v761
    %766 = vst [vmem:[#allocation8 + $0x18] sm:$0xff] %v762
    // Predicated region
    $region34: #{tpu_custom_call.1} parent=1 // pred_check
      _
    $region35: #{tpu_custom_call.1} parent=1 // pred_check_branch
      %768 = sbr.rel (0) target = $region37
    $region36: #{tpu_custom_call.1} parent=1 // pred_region
      %770 = vsyncadd [#allocation5], 0
      %s772 = sshll.u32 [#allocation8], 4
      %s773 = int_to_ptr.vmem [resolvable:$true] %s772
      %s774 = sshll.u32 %s6, 4
      %s775 = int_to_ptr.hbm [resolvable:$true] %s774
      %777 = dma.vmem_to_hbm [thread:$0]  %s773, 512, %s775, [#allocation5]
    $region37: #{tpu_custom_call.1} parent=1 // pred_fallthru
      _
    // Predicated region
    $region38: #{tpu_custom_call.1} parent=1 // pred_check
      _
    $region39: #{tpu_custom_call.1} parent=1 // pred_check_branch
      %779 = sbr.rel (0) target = $region41
    $region40: #{tpu_custom_call.1} parent=1 // pred_region
      %781 = dma.done [#allocation5], 512
    $region41: #{tpu_custom_call.1} parent=1 // pred_fallthru
      _
    %782 = vsyncpa [#allocation4], 1
    %783 = vsyncpa [#allocation7], 1
    %784 = vsyncpa [#allocation5], 1

</llo_original>
